<compile_context>
chip_gen: v5e
topology: v5e:2x2
jax: 0.10.0
libtpu: 0.0.40
codegen_flags: <defaults>
</compile_context>

<pallas_src>
import jax
import jax.numpy as jnp
from jax import lax
from jax.experimental import pallas as pl
from jax.experimental.pallas import tpu as pltpu


_LANES = 128
_ROWS_CHUNK = 64                    # sublane rows per register-resident step
_VMEM_BUDGET = 28 * 1024 * 1024     # double-buffered (in + out) bytes per step
_MAX_ROWS_TILE = 4096
_MIN_ROWS_TILE = 8


def _conv1x1_sigmoid_kernel(w_ref, b_ref, x_ref, o_ref):
    # w_ref: (Cout, Cin) f32 SMEM        b_ref: (Cout,) f32 SMEM
    # x_ref: (Cin, rows_tile, 128) VMEM  o_ref: (Cout, rows_tile, 128) VMEM
    cout, cin = w_ref.shape
    rows = x_ref.shape[1]

    # Hoist all weight / bias scalars (SMEM reads) out of every loop.
    w = [[w_ref[co, ci] for ci in range(cin)] for co in range(cout)]
    b = [b_ref[co] for co in range(cout)]

    def compute_chunk(r0, rc):
        # rc is static; r0 may be dynamic (multiple of _ROWS_CHUNK).
        xs = [x_ref[ci, pl.ds(r0, rc), :] for ci in range(cin)]   # (rc, 128)
        for co in range(cout):
            acc = xs[0].astype(jnp.float32) * w[co][0] + b[co]
            for ci in range(1, cin):
                acc = acc + xs[ci].astype(jnp.float32) * w[co][ci]
            o_ref[co, pl.ds(r0, rc), :] = jax.nn.sigmoid(acc).astype(o_ref.dtype)

    n_full = rows // _ROWS_CHUNK
    rem = rows % _ROWS_CHUNK

    if n_full > 0:
        def body(i, carry):
            r0 = pl.multiple_of(i * _ROWS_CHUNK, _ROWS_CHUNK)
            compute_chunk(r0, _ROWS_CHUNK)
            return carry
        lax.fori_loop(0, n_full, body, 0)
    if rem > 0:
        # Ragged tail (aligned start, masked store) — only hits tiny volumes.
        compute_chunk(n_full * _ROWS_CHUNK, rem)


def _round_up(x, m):
    return ((x + m - 1) // m) * m


def _choose_tiling(n, cin, cout, rows, itemsize):
    """Pick (rows_tile, n_steps): multi-MiB steps, VMEM under budget, tiny pad."""
    per_row = 2 * (cin + cout) * _LANES * itemsize      # dbl-buffered bytes/row
    cap = (_VMEM_BUDGET // per_row) // 8 * 8
    cap = max(_MIN_ROWS_TILE, min(_MAX_ROWS_TILE, cap))
    n_steps = pl.cdiv(rows, cap)
    # Keep >= 2 grid steps for v7x's two TensorCores when there is enough work.
    if n * n_steps < 2 and rows >= 2 * _MIN_ROWS_TILE:
        n_steps = 2
    if n_steps <= 1:
        return rows, 1                      # full-extent block (no /8 constraint)
    rows_tile = _round_up(pl.cdiv(rows, n_steps), 8)
    return rows_tile, n_steps


def output_transition_forward(x, conv_weight, conv_bias):
    """Pallas equivalent of _OutputTransition.forward.

    x:           (N, Cin, D, H, W)    (NCDHW, same as PyTorch)
    conv_weight: (Cout, Cin, 1, 1, 1) (nn.Conv3d weight layout)
    conv_bias:   (Cout,)
    returns:     (N, Cout, D, H, W)
    """
    N, Cin, D, H, W = x.shape
    Cout = conv_weight.shape[0]
    S = D * H * W

    x3 = x.reshape(N, Cin, S)

    itemsize = jnp.dtype(x.dtype).itemsize
    rows = pl.cdiv(S, _LANES)
    rows_tile, n_steps = _choose_tiling(N, Cin, Cout, rows, itemsize)
    rows_pad = rows_tile * n_steps
    Spad = rows_pad * _LANES

    # TODO(synk): for volumes whose D*H*W is not 128/tile aligned this pad and
    # the final slice each cost one extra HBM pass; handle the ragged tail
    # in-kernel (masked tail store) to avoid it.  Aligned volumes skip both.
    if Spad != S:
        x3 = jnp.pad(x3, ((0, 0), (0, 0), (0, Spad - S)))

    # Free, contiguous reshape: spatial -> (sublane rows, 128 lanes).
    x4 = x3.reshape(N, Cin, rows_pad, _LANES)

    w2d = conv_weight.reshape(Cout, Cin).astype(jnp.float32)   # (Cout, Cin)
    b1d = conv_bias.reshape(Cout).astype(jnp.float32)          # (Cout,)

    y4 = pl.pallas_call(
        _conv1x1_sigmoid_kernel,
        out_shape=jax.ShapeDtypeStruct((N, Cout, rows_pad, _LANES), x.dtype),
        grid_spec=pltpu.PrefetchScalarGridSpec(
            num_scalar_prefetch=0,
            grid=(N, n_steps),
            in_specs=[
                pl.BlockSpec(memory_space=pltpu.MemorySpace.SMEM),   # weights
                pl.BlockSpec(memory_space=pltpu.MemorySpace.SMEM),   # bias
                pl.BlockSpec((None, Cin, rows_tile, _LANES),
                             lambda n, s: (n, 0, s, 0)),
            ],
            out_specs=pl.BlockSpec((None, Cout, rows_tile, _LANES),
                                   lambda n, s: (n, 0, s, 0)),
        ),
        compiler_params=pltpu.CompilerParams(
            dimension_semantics=("parallel", "parallel"),
            vmem_limit_bytes=40 * 1024 * 1024,
        ),
    )(w2d, b1d, x4)

    y3 = y4.reshape(N, Cout, Spad)
    if Spad != S:
        y3 = y3[:, :, :S]
    return y3.reshape(N, Cout, D, H, W)


if __name__ == "__main__":
    # Small deterministic example consistent with the module.
    N, Cin, Cout = 2, 4, 3
    D = H = W = 8

    key = jax.random.PRNGKey(0)
    kx, kw, kb = jax.random.split(key, 3)

    x = jax.random.normal(kx, (N, Cin, D, H, W), dtype=jnp.float32)
    # Deterministic synthetic "Conv3d(inChans, n_labels, kernel_size=1)" params.
    conv_weight = jax.random.normal(kw, (Cout, Cin, 1, 1, 1), dtype=jnp.float32) * 0.1
    conv_bias = jax.random.normal(kb, (Cout,), dtype=jnp.float32) * 0.1

    y = output_transition_forward(x, conv_weight, conv_bias)
    y = jax.block_until_ready(y)

    # Reference check in plain JAX (same math as torch Conv3d k=1 + sigmoid).
    w2d = conv_weight.reshape(Cout, Cin)
    ref = jax.nn.sigmoid(
        jnp.einsum("ncdhw,oc->nodhw", x, w2d) + conv_bias[None, :, None, None, None]
    )
    assert y.shape == (N, Cout, D, H, W)
    assert jnp.allclose(y, ref, atol=1e-5, rtol=1e-5)

    print("KERNEL_OK")
</pallas_src>

<mosaic_0001>
module attributes {stable_mosaic.version = 11 : i64} {
  func.func @_conv1x1_sigmoid_kernel(%arg0: i32, %arg1: i32, %arg2: memref<3x4xf32, #tpu.memory_space<smem>>, %arg3: memref<3xf32, #tpu.memory_space<smem>>, %arg4: memref<1x4x4x128xf32, #tpu.memory_space<vmem>>, %arg5: memref<1x3x4x128xf32, #tpu.memory_space<vmem>>) attributes {dimension_semantics = [#tpu.dimension_semantics<parallel>, #tpu.dimension_semantics<parallel>], iteration_bounds = array<i64: 2, 1>, scalar_prefetch = 0 : i64, scratch_operands = 0 : i64, tpu.core_type = #tpu.core_type<tc>, window_params = [{transform_indices = @transform_0, window_bounds = array<i64: 3, 4>}, {transform_indices = @transform_1, window_bounds = array<i64: 3>}, {transform_indices = @transform_2, window_bounds = array<i64: 1, 4, 4, 128>}, {transform_indices = @transform_3, window_bounds = array<i64: 1, 3, 4, 128>}]} {
    %c0 = arith.constant 0 : index
    %c0_0 = arith.constant 0 : index
    %0 = memref.load %arg2[%c0, %c0_0] : memref<3x4xf32, #tpu.memory_space<smem>>
    %c0_1 = arith.constant 0 : index
    %c1 = arith.constant 1 : index
    %1 = memref.load %arg2[%c0_1, %c1] : memref<3x4xf32, #tpu.memory_space<smem>>
    %c0_2 = arith.constant 0 : index
    %c2 = arith.constant 2 : index
    %2 = memref.load %arg2[%c0_2, %c2] : memref<3x4xf32, #tpu.memory_space<smem>>
    %c0_3 = arith.constant 0 : index
    %c3 = arith.constant 3 : index
    %3 = memref.load %arg2[%c0_3, %c3] : memref<3x4xf32, #tpu.memory_space<smem>>
    %c1_4 = arith.constant 1 : index
    %c0_5 = arith.constant 0 : index
    %4 = memref.load %arg2[%c1_4, %c0_5] : memref<3x4xf32, #tpu.memory_space<smem>>
    %c1_6 = arith.constant 1 : index
    %c1_7 = arith.constant 1 : index
    %5 = memref.load %arg2[%c1_6, %c1_7] : memref<3x4xf32, #tpu.memory_space<smem>>
    %c1_8 = arith.constant 1 : index
    %c2_9 = arith.constant 2 : index
    %6 = memref.load %arg2[%c1_8, %c2_9] : memref<3x4xf32, #tpu.memory_space<smem>>
    %c1_10 = arith.constant 1 : index
    %c3_11 = arith.constant 3 : index
    %7 = memref.load %arg2[%c1_10, %c3_11] : memref<3x4xf32, #tpu.memory_space<smem>>
    %c2_12 = arith.constant 2 : index
    %c0_13 = arith.constant 0 : index
    %8 = memref.load %arg2[%c2_12, %c0_13] : memref<3x4xf32, #tpu.memory_space<smem>>
    %c2_14 = arith.constant 2 : index
    %c1_15 = arith.constant 1 : index
    %9 = memref.load %arg2[%c2_14, %c1_15] : memref<3x4xf32, #tpu.memory_space<smem>>
    %c2_16 = arith.constant 2 : index
    %c2_17 = arith.constant 2 : index
    %10 = memref.load %arg2[%c2_16, %c2_17] : memref<3x4xf32, #tpu.memory_space<smem>>
    %c2_18 = arith.constant 2 : index
    %c3_19 = arith.constant 3 : index
    %11 = memref.load %arg2[%c2_18, %c3_19] : memref<3x4xf32, #tpu.memory_space<smem>>
    %c0_20 = arith.constant 0 : index
    %12 = memref.load %arg3[%c0_20] : memref<3xf32, #tpu.memory_space<smem>>
    %c1_21 = arith.constant 1 : index
    %13 = memref.load %arg3[%c1_21] : memref<3xf32, #tpu.memory_space<smem>>
    %c2_22 = arith.constant 2 : index
    %14 = memref.load %arg3[%c2_22] : memref<3xf32, #tpu.memory_space<smem>>
    %c0_23 = arith.constant 0 : index
    %c0_24 = arith.constant 0 : index
    %c0_25 = arith.constant 0 : index
    %c0_26 = arith.constant 0 : index
    %15 = vector.load %arg4[%c0_23, %c0_24, %c0_25, %c0_26] : memref<1x4x4x128xf32, #tpu.memory_space<vmem>>, vector<1x1x4x128xf32>
    %16 = vector.shape_cast %15 : vector<1x1x4x128xf32> to vector<4x128xf32>
    %c0_27 = arith.constant 0 : index
    %c1_28 = arith.constant 1 : index
    %c0_29 = arith.constant 0 : index
    %c0_30 = arith.constant 0 : index
    %17 = vector.load %arg4[%c0_27, %c1_28, %c0_29, %c0_30] : memref<1x4x4x128xf32, #tpu.memory_space<vmem>>, vector<1x1x4x128xf32>
    %18 = vector.shape_cast %17 : vector<1x1x4x128xf32> to vector<4x128xf32>
    %c0_31 = arith.constant 0 : index
    %c2_32 = arith.constant 2 : index
    %c0_33 = arith.constant 0 : index
    %c0_34 = arith.constant 0 : index
    %19 = vector.load %arg4[%c0_31, %c2_32, %c0_33, %c0_34] : memref<1x4x4x128xf32, #tpu.memory_space<vmem>>, vector<1x1x4x128xf32>
    %20 = vector.shape_cast %19 : vector<1x1x4x128xf32> to vector<4x128xf32>
    %c0_35 = arith.constant 0 : index
    %c3_36 = arith.constant 3 : index
    %c0_37 = arith.constant 0 : index
    %c0_38 = arith.constant 0 : index
    %21 = vector.load %arg4[%c0_35, %c3_36, %c0_37, %c0_38] : memref<1x4x4x128xf32, #tpu.memory_space<vmem>>, vector<1x1x4x128xf32>
    %22 = vector.shape_cast %21 : vector<1x1x4x128xf32> to vector<4x128xf32>
    %23 = vector.broadcast %0 : f32 to vector<4x128xf32>
    %24 = arith.mulf %16, %23 : vector<4x128xf32>
    %25 = vector.broadcast %12 : f32 to vector<4x128xf32>
    %26 = arith.addf %24, %25 : vector<4x128xf32>
    %27 = vector.broadcast %1 : f32 to vector<4x128xf32>
    %28 = arith.mulf %18, %27 : vector<4x128xf32>
    %29 = arith.addf %26, %28 : vector<4x128xf32>
    %30 = vector.broadcast %2 : f32 to vector<4x128xf32>
    %31 = arith.mulf %20, %30 : vector<4x128xf32>
    %32 = arith.addf %29, %31 : vector<4x128xf32>
    %33 = vector.broadcast %3 : f32 to vector<4x128xf32>
    %34 = arith.mulf %22, %33 : vector<4x128xf32>
    %35 = arith.addf %32, %34 : vector<4x128xf32>
    %36 = arith.negf %35 : vector<4x128xf32>
    %37 = math.exp %36 : vector<4x128xf32>
    %cst = arith.constant 1.000000e+00 : f32
    %38 = vector.broadcast %cst : f32 to vector<4x128xf32>
    %39 = arith.addf %38, %37 : vector<4x128xf32>
    %40 = arith.divf %38, %39 : vector<4x128xf32>
    %c0_39 = arith.constant 0 : index
    %c0_40 = arith.constant 0 : index
    %c0_41 = arith.constant 0 : index
    %c0_42 = arith.constant 0 : index
    %41 = vector.load %arg5[%c0_39, %c0_40, %c0_41, %c0_42] : memref<1x3x4x128xf32, #tpu.memory_space<vmem>>, vector<1x1x4x128xf32>
    %42 = vector.shape_cast %41 : vector<1x1x4x128xf32> to vector<4x128xf32>
    %43 = vector.shape_cast %40 : vector<4x128xf32> to vector<1x1x4x128xf32>
    tpu.vector_store %arg5[%c0_39, %c0_40, %c0_41, %c0_42], %43 {strides = array<i32>} : memref<1x3x4x128xf32, #tpu.memory_space<vmem>>, vector<1x1x4x128xf32>,
    %44 = vector.broadcast %4 : f32 to vector<4x128xf32>
    %45 = arith.mulf %16, %44 : vector<4x128xf32>
    %46 = vector.broadcast %13 : f32 to vector<4x128xf32>
    %47 = arith.addf %45, %46 : vector<4x128xf32>
    %48 = vector.broadcast %5 : f32 to vector<4x128xf32>
    %49 = arith.mulf %18, %48 : vector<4x128xf32>
    %50 = arith.addf %47, %49 : vector<4x128xf32>
    %51 = vector.broadcast %6 : f32 to vector<4x128xf32>
    %52 = arith.mulf %20, %51 : vector<4x128xf32>
    %53 = arith.addf %50, %52 : vector<4x128xf32>
    %54 = vector.broadcast %7 : f32 to vector<4x128xf32>
    %55 = arith.mulf %22, %54 : vector<4x128xf32>
    %56 = arith.addf %53, %55 : vector<4x128xf32>
    %57 = arith.negf %56 : vector<4x128xf32>
    %58 = math.exp %57 : vector<4x128xf32>
    %cst_43 = arith.constant 1.000000e+00 : f32
    %59 = vector.broadcast %cst_43 : f32 to vector<4x128xf32>
    %60 = arith.addf %59, %58 : vector<4x128xf32>
    %61 = arith.divf %59, %60 : vector<4x128xf32>
    %c0_44 = arith.constant 0 : index
    %c1_45 = arith.constant 1 : index
    %c0_46 = arith.constant 0 : index
    %c0_47 = arith.constant 0 : index
    %62 = vector.load %arg5[%c0_44, %c1_45, %c0_46, %c0_47] : memref<1x3x4x128xf32, #tpu.memory_space<vmem>>, vector<1x1x4x128xf32>
    %63 = vector.shape_cast %62 : vector<1x1x4x128xf32> to vector<4x128xf32>
    %64 = vector.shape_cast %61 : vector<4x128xf32> to vector<1x1x4x128xf32>
    tpu.vector_store %arg5[%c0_44, %c1_45, %c0_46, %c0_47], %64 {strides = array<i32>} : memref<1x3x4x128xf32, #tpu.memory_space<vmem>>, vector<1x1x4x128xf32>,
    %65 = vector.broadcast %8 : f32 to vector<4x128xf32>
    %66 = arith.mulf %16, %65 : vector<4x128xf32>
    %67 = vector.broadcast %14 : f32 to vector<4x128xf32>
    %68 = arith.addf %66, %67 : vector<4x128xf32>
    %69 = vector.broadcast %9 : f32 to vector<4x128xf32>
    %70 = arith.mulf %18, %69 : vector<4x128xf32>
    %71 = arith.addf %68, %70 : vector<4x128xf32>
    %72 = vector.broadcast %10 : f32 to vector<4x128xf32>
    %73 = arith.mulf %20, %72 : vector<4x128xf32>
    %74 = arith.addf %71, %73 : vector<4x128xf32>
    %75 = vector.broadcast %11 : f32 to vector<4x128xf32>
    %76 = arith.mulf %22, %75 : vector<4x128xf32>
    %77 = arith.addf %74, %76 : vector<4x128xf32>
    %78 = arith.negf %77 : vector<4x128xf32>
    %79 = math.exp %78 : vector<4x128xf32>
    %cst_48 = arith.constant 1.000000e+00 : f32
    %80 = vector.broadcast %cst_48 : f32 to vector<4x128xf32>
    %81 = arith.addf %80, %79 : vector<4x128xf32>
    %82 = arith.divf %80, %81 : vector<4x128xf32>
    %c0_49 = arith.constant 0 : index
    %c2_50 = arith.constant 2 : index
    %c0_51 = arith.constant 0 : index
    %c0_52 = arith.constant 0 : index
    %83 = vector.load %arg5[%c0_49, %c2_50, %c0_51, %c0_52] : memref<1x3x4x128xf32, #tpu.memory_space<vmem>>, vector<1x1x4x128xf32>
    %84 = vector.shape_cast %83 : vector<1x1x4x128xf32> to vector<4x128xf32>
    %85 = vector.shape_cast %82 : vector<4x128xf32> to vector<1x1x4x128xf32>
    tpu.vector_store %arg5[%c0_49, %c2_50, %c0_51, %c0_52], %85 {strides = array<i32>} : memref<1x3x4x128xf32, #tpu.memory_space<vmem>>, vector<1x1x4x128xf32>,
    return
  }
  func.func @transform_0(%arg0: i32, %arg1: i32) -> (i32, i32) {
    %c0_i32 = arith.constant 0 : i32
    %c0_i32_0 = arith.constant 0 : i32
    %c0_i32_1 = arith.constant 0 : i32
    return %c0_i32, %c0_i32_0 : i32, i32
  }
  func.func @transform_1(%arg0: i32, %arg1: i32) -> i32 {
    %c0_i32 = arith.constant 0 : i32
    %c0_i32_0 = arith.constant 0 : i32
    return %c0_i32 : i32
  }
  func.func @transform_2(%arg0: i32, %arg1: i32) -> (i32, i32, i32, i32) {
    %c0_i32 = arith.constant 0 : i32
    %c0_i32_0 = arith.constant 0 : i32
    %c0_i32_1 = arith.constant 0 : i32
    return %arg0, %c0_i32, %arg1, %c0_i32_0 : i32, i32, i32, i32
  }
  func.func @transform_3(%arg0: i32, %arg1: i32) -> (i32, i32, i32, i32) {
    %c0_i32 = arith.constant 0 : i32
    %c0_i32_0 = arith.constant 0 : i32
    %c0_i32_1 = arith.constant 0 : i32
    return %arg0, %c0_i32, %arg1, %c0_i32_0 : i32, i32, i32, i32
  }
}

</mosaic_0001>

<llo_original>
// kernel: tpu_custom_call.1
$region0: #{tpu_custom_call.1}
  #allocation0 [shape = 'u32[]', space=smem, size = 0x4, offset = 0x4, fixed_abs, tag = 'smem constant byte address 0x4 - core index']
  #allocation1 [shape = 'u32[72,128]{1,0:T(1,128)}', space=vmem, size = 0x9000, scoped, tag = 'internal scratch']
  %s0 = inlined_call_operand.hbm [shape: f32[3,4], index: 0, kind: input, shape index: {}]
  %s1 = inlined_call_operand.hbm [shape: f32[3], index: 1, kind: input, shape index: {}]
  %s2 = inlined_call_operand.hbm [shape: f32[2,4,4,128], index: 2, kind: input, shape index: {}]
  %s3 = inlined_call_operand.hbm [shape: f32[2,3,4,128], index: 3, kind: output, shape index: {}]
  %s4 = sld [smem:[#allocation0]]
  $region57: #{tpu_custom_call.1} parent=0
    _
  %s6 = ssub.s32 1, %s4
  %s7 = scalar_select 0, %s6, %s4
  $region1: #{tpu_custom_call.1} parent=0
    #allocation2 [shape = 'u8[2048]{0}', space=smem, size = 0x800, scoped, tag = 'input window, operand 0, single buffered']
    #allocation3 [shape = 's32[2]{0}', space=sflag, size = 0x8, scoped, tag = 'scoped memory for tpu_custom_call.1']
    #allocation4 [shape = 's32[2]{0}', space=sflag, size = 0x8, scoped, tag = 'scoped memory for tpu_custom_call.1']
    #allocation5 [shape = 's32[2]{0}', space=sflag, size = 0x8, scoped, tag = 'scoped memory for tpu_custom_call.1']
    #allocation6 [shape = 'u8[512]{0}', space=smem, size = 0x200, scoped, tag = 'input window, operand 1, single buffered']
    #allocation7 [shape = 's32[1]{0}', space=sflag, size = 0x4, scoped, tag = 'scoped memory for tpu_custom_call.1']
    #allocation8 [shape = 'u8[16384]{0}', space=vmem, size = 0x4000, scoped, tag = 'input window, operand 2']
    #allocation9 [shape = 'u8[12288]{0}', space=vmem, size = 0x3000, scoped, tag = 'output window, operand 0']
    %8 = vsyncpa [#allocation5], 0
    %9 = vsyncpa [#allocation7], 0
    %10 = vsyncpa [#allocation3], 0
    %s11 = scalar_lea.sflag [#allocation3], 1
    %12 = vsyncpa %s11, 0
    %13 = vsyncpa [#allocation4], 0
    %s14 = scalar_lea.sflag [#allocation4], 1
    %15 = vsyncpa %s14, 0
    loop: start=0, step=1, limit=4
    $region2: #{tpu_custom_call.1} parent=1 // loop_pre_header
      _
    $region3: #{tpu_custom_call.1} parent=1 // loop_header
      %s17 = sphi 0, %s21
      %p18 = scmp.ge.s32.totalorder %s17, 4
      %s24 = sphi 0, %s36
      %s25 = sphi 0, %s32
      %s26 = sphi 0, %s24
      %s27 = sphi 0, %s25
      %s28 = sphi 0, %s26
      %s29 = sphi 0, %s27
      %s37 = sphi 0, %s37
      %s39 = sphi 0, %s37
      %s40 = sphi 0, %s39
      %s54 = sphi 0, %s40
      %s58 = sphi 0, %s58
      %s60 = sphi 0, %s58
      %s61 = sphi 0, %s60
      %s75 = sphi 0, %s61
      %s83 = sphi 0, %s85
      %s86 = sphi 0, %s83
      %s87 = sphi 0, %s86
      %s103 = sphi 0, %s87
      %s111 = sphi 0, %s113
      %s114 = sphi 0, %s111
      %s115 = sphi 0, %s114
      %s131 = sphi 0, %s115
    $region4: #{tpu_custom_call.1} parent=1 // loop_header_branch
      %20 = sbr.rel (%p18) target = $region8
    $region5: #{tpu_custom_call.1} parent=1 // loop_body
      %s22 = ssub.s32 %s17, 1
      %s23 = ssub.s32 %s17, 2
      %s30 = sadd.s32 1, %s25
      %p31 = scmp.ge.s32.totalorder %s30, 1
      %s32 = scalar_select %p31, 0, %s30
      %s33 = sadd.s32 1, %s24
      %s34 = scalar_select %p31, %s33, %s24
      %p35 = scmp.ge.s32.totalorder %s34, 2
      %s36 = scalar_select %p35, 0, %s34
      %s38 = sadd.s32 %s37, 1
      %p41 = scmp.eq.s32.totalorder %s17, 1
      %p42 = scmp.ne.s32.totalorder %s37, %s39
      %p43 = scmp.eq.s32.totalorder %s17, 0
      %p44 = por %p42, %p43
      %p45 = scmp.ne.s32.totalorder %s37, %s39
      %p46 = scmp.eq.s32.totalorder %s22, 1
      %p47 = por %p45, %p46
      %p48 = scmp.ne.s32.totalorder %s39, %s40
      %p49 = scmp.eq.s32.totalorder %s22, 0
      %p50 = por %p48, %p49
      %p51 = scmp.ne.s32.totalorder %s39, %s40
      %p52 = scmp.eq.s32.totalorder %s23, 1
      %p53 = por %p51, %p52
      %p55 = scmp.ne.s32.totalorder %s40, %s54
      %p56 = scmp.eq.s32.totalorder %s23, 0
      %p57 = por %p55, %p56
      %s59 = sadd.s32 %s58, 1
      %p62 = scmp.eq.s32.totalorder %s17, 1
      %p63 = scmp.ne.s32.totalorder %s58, %s60
      %p64 = scmp.eq.s32.totalorder %s17, 0
      %p65 = por %p63, %p64
      %p66 = scmp.ne.s32.totalorder %s58, %s60
      %p67 = scmp.eq.s32.totalorder %s22, 1
      %p68 = por %p66, %p67
      %p69 = scmp.ne.s32.totalorder %s60, %s61
      %p70 = scmp.eq.s32.totalorder %s22, 0
      %p71 = por %p69, %p70
      %p72 = scmp.ne.s32.totalorder %s60, %s61
      %p73 = scmp.eq.s32.totalorder %s23, 1
      %p74 = por %p72, %p73
      %p76 = scmp.ne.s32.totalorder %s61, %s75
      %p77 = scmp.eq.s32.totalorder %s23, 0
      %p78 = por %p76, %p77
      %s79 = ssub.s32 %s24, %s36
      %s80 = ssub.s32 %s25, %s32
      %s81 = sor.u32 %s79, %s80
      %p82 = scmp.eq.s32.totalorder %s81, 0
      %s84 = sadd.s32 %s83, 1
      %s85 = scalar_select %p82, %s83, %s84
      %p88 = pneg %p82
      %p89 = scmp.eq.s32.totalorder %s17, 1
      %p90 = por %p88, %p89
      %p91 = scmp.ne.s32.totalorder %s83, %s86
      %p92 = scmp.eq.s32.totalorder %s17, 0
      %p93 = por %p91, %p92
      %p94 = scmp.ne.s32.totalorder %s83, %s86
      %p95 = scmp.eq.s32.totalorder %s22, 1
      %p96 = por %p94, %p95
      %p97 = scmp.ne.s32.totalorder %s86, %s87
      %p98 = scmp.eq.s32.totalorder %s22, 0
      %p99 = por %p97, %p98
      %p100 = scmp.ne.s32.totalorder %s86, %s87
      %p101 = scmp.eq.s32.totalorder %s23, 1
      %p102 = por %p100, %p101
      %p104 = scmp.ne.s32.totalorder %s87, %s103
      %p105 = scmp.eq.s32.totalorder %s23, 0
      %p106 = por %p104, %p105
      %s107 = ssub.s32 %s24, %s36
      %s108 = ssub.s32 %s25, %s32
      %s109 = sor.u32 %s107, %s108
      %p110 = scmp.eq.s32.totalorder %s109, 0
      %s112 = sadd.s32 %s111, 1
      %s113 = scalar_select %p110, %s111, %s112
      %p116 = pneg %p110
      %p117 = scmp.eq.s32.totalorder %s17, 1
      %p118 = por %p116, %p117
      %p119 = scmp.ne.s32.totalorder %s111, %s114
      %p120 = scmp.eq.s32.totalorder %s17, 0
      %p121 = por %p119, %p120
      %p122 = scmp.ne.s32.totalorder %s111, %s114
      %p123 = scmp.eq.s32.totalorder %s22, 1
      %p124 = por %p122, %p123
      %p125 = scmp.ne.s32.totalorder %s114, %s115
      %p126 = scmp.eq.s32.totalorder %s22, 0
      %p127 = por %p125, %p126
      %p128 = scmp.ne.s32.totalorder %s114, %s115
      %p129 = scmp.eq.s32.totalorder %s23, 1
      %p130 = por %p128, %p129
      %p132 = scmp.ne.s32.totalorder %s115, %s131
      %p133 = scmp.eq.s32.totalorder %s23, 0
      %p134 = por %p132, %p133
      %p135 = scmp.le.s32.totalorder 1, %s17
      %p136 = scmp.lt.s32.totalorder %s17, 3
      %p137 = pnand %p135, %p136
      %p138 = pneg %p137
      // Predicated region
      $region9: #{tpu_custom_call.1} parent=5 // pred_check
        _
      $region10: #{tpu_custom_call.1} parent=5 // pred_check_branch
        %140 = sbr.rel (%p137) target = $region12
      $region11: #{tpu_custom_call.1} parent=5 // pred_region
        %s141 = ssub.s32 %s17, 1
        // Predicated region
        $region13: #{tpu_custom_call.1} parent=11 // pred_check
          %p142 = pneg %p50
        $region14: #{tpu_custom_call.1} parent=11 // pred_check_branch
          %144 = sbr.rel (%p142) target = $region16
        $region15: #{tpu_custom_call.1} parent=11 // pred_region
          %146 = vsyncadd [#allocation5], 0
          %s148 = sshll.u32 %s0, 4
          %s149 = int_to_ptr.hbm [resolvable:$true] %s148
          %151 = dma.hbm_to_smem %s149, 64, [#allocation2], [#allocation5]
        $region16: #{tpu_custom_call.1} parent=11 // pred_fallthru
          _
        // Predicated region
        $region17: #{tpu_custom_call.1} parent=11 // pred_check
          %p152 = pneg %p71
        $region18: #{tpu_custom_call.1} parent=11 // pred_check_branch
          %154 = sbr.rel (%p152) target = $region20
        $region19: #{tpu_custom_call.1} parent=11 // pred_region
          %156 = vsyncadd [#allocation7], 0
          %s158 = sshll.u32 %s1, 4
          %s159 = int_to_ptr.hbm [resolvable:$true] %s158
          %161 = dma.hbm_to_smem %s159, 16, [#allocation6], [#allocation7]
        $region20: #{tpu_custom_call.1} parent=11 // pred_fallthru
          _
      $region12: #{tpu_custom_call.1} parent=5 // pred_fallthru
        _
      %p162 = scmp.lt.s32.totalorder %s17, 2
      // Predicated region
      $region21: #{tpu_custom_call.1} parent=5 // pred_check
        %p163 = pneg %p162
      $region22: #{tpu_custom_call.1} parent=5 // pred_check_branch
        %165 = sbr.rel (%p163) target = $region24
      $region23: #{tpu_custom_call.1} parent=5 // pred_region
        // Predicated region
        $region25: #{tpu_custom_call.1} parent=23 // pred_check
          %p166 = pneg %p93
        $region26: #{tpu_custom_call.1} parent=23 // pred_check_branch
          %168 = sbr.rel (%p166) target = $region28
        $region27: #{tpu_custom_call.1} parent=23 // pred_region
          %s169 = sand.u32 %s83, 1
          %s170 = scalar_lea.sflag [#allocation3], %s169
          %s171 = sand.u32 %s83, 1
          %s172 = smul.addr %s171, 16
          %s173 = scalar_lea.vmem [#allocation8], %s172
          %175 = vsyncadd %s170, 0
          %s176 = smul.addr %s24, 4
          %s177 = sadd.s32 %s25, %s176
          %s178 = smul.addr %s177, 4
          %s179 = scalar_lea.hbm %s2, %s178
          %s180 = sshll.u32 %s179, 4
          %s181 = int_to_ptr.hbm [resolvable:$true] %s180
          %s182 = sshll.u32 %s173, 4
          %s183 = int_to_ptr.vmem [resolvable:$true] %s182
          %188 = dma.hbm_to_vmem [thread:$0]  %s181, 256, %s183, %s170, 64, 64, 4
        $region28: #{tpu_custom_call.1} parent=23 // pred_fallthru
          _
      $region24: #{tpu_custom_call.1} parent=5 // pred_fallthru
        _
      %p189 = scmp.le.s32.totalorder 1, %s17
      %p190 = scmp.lt.s32.totalorder %s17, 3
      %p191 = pnand %p189, %p190
      %p192 = pneg %p191
      // Predicated region
      $region29: #{tpu_custom_call.1} parent=5 // pred_check
        _
      $region30: #{tpu_custom_call.1} parent=5 // pred_check_branch
        %194 = sbr.rel (%p191) target = $region32
      $region31: #{tpu_custom_call.1} parent=5 // pred_region
        %s195 = ssub.s32 %s17, 1
        // Predicated region
        $region33: #{tpu_custom_call.1} parent=31 // pred_check
          %p196 = pneg %p50
        $region34: #{tpu_custom_call.1} parent=31 // pred_check_branch
          %198 = sbr.rel (%p196) target = $region36
        $region35: #{tpu_custom_call.1} parent=31 // pred_region
          %200 = dma.done [#allocation5], 64
        $region36: #{tpu_custom_call.1} parent=31 // pred_fallthru
          _
        // Predicated region
        $region37: #{tpu_custom_call.1} parent=31 // pred_check
          %p201 = pneg %p71
        $region38: #{tpu_custom_call.1} parent=31 // pred_check_branch
          %203 = sbr.rel (%p201) target = $region40
        $region39: #{tpu_custom_call.1} parent=31 // pred_region
          %205 = dma.done [#allocation7], 16
        $region40: #{tpu_custom_call.1} parent=31 // pred_fallthru
          _
        %s206 = sand.u32 %s86, 1
        %s207 = scalar_lea.sflag [#allocation3], %s206
        %s208 = sand.u32 %s86, 1
        %s209 = smul.addr %s208, 16
        %s210 = scalar_lea.vmem [#allocation8], %s209
        // Predicated region
        $region41: #{tpu_custom_call.1} parent=31 // pred_check
          %p211 = pneg %p99
        $region42: #{tpu_custom_call.1} parent=31 // pred_check_branch
          %213 = sbr.rel (%p211) target = $region44
        $region43: #{tpu_custom_call.1} parent=31 // pred_region
          %215 = dma.done %s207, 256
        $region44: #{tpu_custom_call.1} parent=31 // pred_fallthru
          _
        %216 = sfence
        %p217 = pneg %p50
        %p218 = pneg %p47
        %p219 = pneg %p71
        %p220 = pneg %p68
        %s221 = sand.u32 %s86, 1
        %s222 = scalar_lea.sflag [#allocation3], %s221
        %s223 = sand.u32 %s86, 1
        %s224 = smul.addr %s223, 16
        %s225 = scalar_lea.vmem [#allocation8], %s224
        %p226 = pneg %p99
        %p227 = pneg %p96
        %p228 = pneg %p127
        %p229 = pneg %p124
        %s230 = sand.u32 %s114, 1
        %s231 = scalar_lea.sflag [#allocation4], %s230
        %s232 = sand.u32 %s114, 1
        %s233 = smul.addr %s232, 12
        %s234 = scalar_lea.vmem [#allocation9], %s233
        %s235 = sld [smem:[#allocation2]]
        %s236 = sld [smem:[#allocation2 + $0x1]]
        %s237 = sld [smem:[#allocation2 + $0x2]]
        %s238 = sld [smem:[#allocation2 + $0x3]]
        %s239 = sld [smem:[#allocation2 + $0x80]]
        %s240 = sld [smem:[#allocation2 + $0x81]]
        %s241 = sld [smem:[#allocation2 + $0x82]]
        %s242 = sld [smem:[#allocation2 + $0x83]]
        %s243 = sld [smem:[#allocation2 + $0x100]]
        %s244 = sld [smem:[#allocation2 + $0x101]]
        %s245 = sld [smem:[#allocation2 + $0x102]]
        %s246 = sld [smem:[#allocation2 + $0x103]]
        %s247 = sld [smem:[#allocation6]]
        %s248 = sld [smem:[#allocation6 + $0x1]]
        %s249 = sld [smem:[#allocation6 + $0x2]]
        %v250 = vld [vmem:[%s210] sm:$0xf]
        %s251 = scalar_lea.vmem %s210, 4 [#allocation8]
        %v252 = vld [vmem:[%s251] sm:$0xf]
        %s253 = scalar_lea.vmem %s210, 8 [#allocation8]
        %v254 = vld [vmem:[%s253] sm:$0xf]
        %s255 = scalar_lea.vmem %s210, 12 [#allocation8]
        %v256 = vld [vmem:[%s255] sm:$0xf]
        %v257 = vstv %s235
        %v258 = vmul.f32 %v250, %v257
        %v259 = vstv %s247
        %v260 = vadd.f32 %v258, %v259
        %v261 = vstv %s236
        %v262 = vmul.f32 %v252, %v261
        %v263 = vadd.f32 %v260, %v262
        %v264 = vstv %s237
        %v265 = vmul.f32 %v254, %v264
        %v266 = vadd.f32 %v263, %v265
        %v267 = vstv %s238
        %v268 = vmul.f32 %v256, %v267
        %v269 = vadd.f32 %v266, %v268
        %v270 = vxor.u32 %v269, 2147483648
        %v271 = vmul.f32 %v270, 1.442695
        %v272 = vpow.pop %v271
        %v273 = vadd.f32 %v272, 1.0
        %v274 = vrcp.pop %v273
        %v275 = vmul.f32 %v273, %v274
        %v276 = vsub.f32 1.0, %v275
        %v277 = vmul.f32 %v274, %v276
        %v278 = vadd.f32 %v274, %v277
        %vm279 = vweird.f32 %v273
        %vm280 = vweird.f32 %v274
        %vm281 = vmor %vm279, %vm280
        %v282 = vsel %vm281, %v274, %v278
        %v283 = vand.u32 2147483647, %v273
        %vm284 = vcmp.eq.f32.partialorder %v283, 8.507059e+37
        %v285 = vand.u32 %v273, 2147483648
        %v286 = vor.u32 1.1754944e-38, %v285
        %v287 = vsel %vm284, %v286, %v282
        %v288 = vmul.f32 1.0, %v287
        %289 = vst [vmem:[%s234] sm:$0xf] %v288
        %v290 = vstv %s239
        %v291 = vmul.f32 %v250, %v290
        %v292 = vstv %s248
        %v293 = vadd.f32 %v291, %v292
        %v294 = vstv %s240
        %v295 = vmul.f32 %v252, %v294
        %v296 = vadd.f32 %v293, %v295
        %v297 = vstv %s241
        %v298 = vmul.f32 %v254, %v297
        %v299 = vadd.f32 %v296, %v298
        %v300 = vstv %s242
        %v301 = vmul.f32 %v256, %v300
        %v302 = vadd.f32 %v299, %v301
        %v303 = vxor.u32 %v302, 2147483648
        %v304 = vmul.f32 %v303, 1.442695
        %v305 = vpow.pop %v304
        %v306 = vadd.f32 %v305, 1.0
        %v307 = vrcp.pop %v306
        %v308 = vmul.f32 %v306, %v307
        %v309 = vsub.f32 1.0, %v308
        %v310 = vmul.f32 %v307, %v309
        %v311 = vadd.f32 %v307, %v310
        %vm312 = vweird.f32 %v306
        %vm313 = vweird.f32 %v307
        %vm314 = vmor %vm312, %vm313
        %v315 = vsel %vm314, %v307, %v311
        %v316 = vand.u32 2147483647, %v306
        %vm317 = vcmp.eq.f32.partialorder %v316, 8.507059e+37
        %v318 = vand.u32 %v306, 2147483648
        %v319 = vor.u32 1.1754944e-38, %v318
        %v320 = vsel %vm317, %v319, %v315
        %v321 = vmul.f32 1.0, %v320
        %s322 = scalar_lea.vmem %s234, 4 [#allocation9]
        %323 = vst [vmem:[%s322] sm:$0xf] %v321
        %v324 = vstv %s243
        %v325 = vmul.f32 %v250, %v324
        %v326 = vstv %s249
        %v327 = vadd.f32 %v325, %v326
        %v328 = vstv %s244
        %v329 = vmul.f32 %v252, %v328
        %v330 = vadd.f32 %v327, %v329
        %v331 = vstv %s245
        %v332 = vmul.f32 %v254, %v331
        %v333 = vadd.f32 %v330, %v332
        %v334 = vstv %s246
        %v335 = vmul.f32 %v256, %v334
        %v336 = vadd.f32 %v333, %v335
        %v337 = vxor.u32 %v336, 2147483648
        %v338 = vmul.f32 %v337, 1.442695
        %v339 = vpow.pop %v338
        %v340 = vadd.f32 %v339, 1.0
        %v341 = vrcp.pop %v340
        %v342 = vmul.f32 %v340, %v341
        %v343 = vsub.f32 1.0, %v342
        %v344 = vmul.f32 %v341, %v343
        %v345 = vadd.f32 %v341, %v344
        %vm346 = vweird.f32 %v340
        %vm347 = vweird.f32 %v341
        %vm348 = vmor %vm346, %vm347
        %v349 = vsel %vm348, %v341, %v345
        %v350 = vand.u32 2147483647, %v340
        %vm351 = vcmp.eq.f32.partialorder %v350, 8.507059e+37
        %v352 = vand.u32 %v340, 2147483648
        %v353 = vor.u32 1.1754944e-38, %v352
        %v354 = vsel %vm351, %v353, %v349
        %v355 = vmul.f32 1.0, %v354
        %s356 = scalar_lea.vmem %s234, 8 [#allocation9]
        %357 = vst [vmem:[%s356] sm:$0xf] %v355
        %s358 = sand.u32 %s114, 1
        %s359 = scalar_lea.sflag [#allocation4], %s358
        %s360 = sand.u32 %s114, 1
        %s361 = smul.addr %s360, 12
        %s362 = scalar_lea.vmem [#allocation9], %s361
        // Predicated region
        $region45: #{tpu_custom_call.1} parent=31 // pred_check
          %p363 = pneg %p124
        $region46: #{tpu_custom_call.1} parent=31 // pred_check_branch
          %365 = sbr.rel (%p363) target = $region48
        $region47: #{tpu_custom_call.1} parent=31 // pred_region
          %367 = vsyncadd %s359, 0
          %s368 = smul.addr %s26, 3
          %s369 = sadd.s32 %s27, %s368
          %s370 = smul.addr %s369, 4
          %s371 = scalar_lea.hbm %s3, %s370
          %s372 = sshll.u32 %s362, 4
          %s373 = int_to_ptr.vmem [resolvable:$true] %s372
          %s374 = sshll.u32 %s371, 4
          %s375 = int_to_ptr.hbm [resolvable:$true] %s374
          %380 = dma.vmem_to_hbm [thread:$0]  %s373, 192, %s375, %s359, 64, 64, 4
        $region48: #{tpu_custom_call.1} parent=31 // pred_fallthru
          _
      $region32: #{tpu_custom_call.1} parent=5 // pred_fallthru
        _
      %p381 = scmp.le.s32.totalorder 2, %s17
      // Predicated region
      $region49: #{tpu_custom_call.1} parent=5 // pred_check
        %p382 = pneg %p381
      $region50: #{tpu_custom_call.1} parent=5 // pred_check_branch
        %384 = sbr.rel (%p382) target = $region52
      $region51: #{tpu_custom_call.1} parent=5 // pred_region
        %s385 = ssub.s32 %s17, 2
        // Predicated region
        $region53: #{tpu_custom_call.1} parent=51 // pred_check
          %p386 = pneg %p130
        $region54: #{tpu_custom_call.1} parent=51 // pred_check_branch
          %388 = sbr.rel (%p386) target = $region56
        $region55: #{tpu_custom_call.1} parent=51 // pred_region
          %s389 = sand.u32 %s115, 1
          %s390 = scalar_lea.sflag [#allocation4], %s389
          %s391 = sand.u32 %s115, 1
          %s392 = smul.addr %s391, 12
          %s393 = scalar_lea.vmem [#allocation9], %s392
          %395 = dma.done %s390, 192
        $region56: #{tpu_custom_call.1} parent=51 // pred_fallthru
          _
      $region52: #{tpu_custom_call.1} parent=5 // pred_fallthru
        _
    $region6: #{tpu_custom_call.1} parent=1 // loop_footer
      %s21 = sadd.s32 1, %s17
    $region7: #{tpu_custom_call.1} parent=1 // loop_footer_branch
      %16 = sbr.rel target = $region3
    $region8: #{tpu_custom_call.1} parent=1 // loop_exit
      _
    %396 = vsyncpa [#allocation3], 1
    %s397 = scalar_lea.sflag [#allocation3], 1
    %398 = vsyncpa %s397, 1
    %399 = vsyncpa [#allocation4], 1
    %s400 = scalar_lea.sflag [#allocation4], 1
    %401 = vsyncpa %s400, 1
    %402 = vsyncpa [#allocation5], 1
    %s403 = scalar_lea.sflag [#allocation5], 1
    %404 = vsyncpa %s403, 1
    %405 = vsyncpa [#allocation7], 1

</llo_original>
